<compile_context>
chip_gen: v5e
topology: v5e:2x2
jax: 0.10.0
libtpu: 0.0.40
codegen_flags: <defaults>
</compile_context>

<pallas_src>
import numpy as np
import jax
import jax.numpy as jnp
from jax.experimental import pallas as pl
from jax.experimental.pallas import tpu as pltpu


# ----------------------------- host-side constants ----------------------------
def _gaussian_1d(scale):
    """Normalized 1-D Gaussian taps matching the PyTorch module (its 2-D kernel is
    the outer product of this with itself)."""
    sigma = (1.0 / scale - 1.0) / 2.0
    ksize = 2 * round(sigma * 4) + 1
    ka = ksize // 2
    kb = ka - 1 if ksize % 2 == 0 else ka
    coords = np.arange(ksize, dtype=np.float64)
    mean = (ksize - 1) / 2.0
    g = np.exp(-((coords - mean) ** 2) / (2.0 * sigma ** 2))
    return g / g.sum(), ka, kb


def _blur_matrix(n, g, ka):
    """(n, n) matrix B with  B @ x  ==  zero-pad-by-(ka, k-1-ka) then 'valid' 1-D
    cross-correlation with taps g (exactly F.pad + F.conv2d along one axis)."""
    k = len(g)
    m = np.zeros((n, n), dtype=np.float64)
    for y in range(n):
        for t in range(k):
            src = y + t - ka
            if 0 <= src < n:
                m[y, src] += g[t]
    return m


def _interp_matrix(n_in, n_out):
    """Bilinear resampling matrix, align_corners=True (PyTorch semantics)."""
    m = np.zeros((n_out, n_in), dtype=np.float64)
    if n_out == 1:
        m[0, 0] = 1.0
        return m
    for i in range(n_out):
        src = i * (n_in - 1) / (n_out - 1)
        i0 = int(np.floor(src))
        i1 = min(i0 + 1, n_in - 1)
        frac = src - i0
        m[i, i0] += 1.0 - frac
        m[i, i1] += frac
    return m


# ------------------------------- fused kernel ---------------------------------
def _make_kernel(bc, h, wo):
    """x_ref: (bc*H, W) | r_ref: (Ho, H) | c_ref: (W, Wo) | o_ref: (Ho, bc*Wo)."""

    def kernel(x_ref, r_ref, c_ref, o_ref):
        # MXU matmul 1: column blur+resample for all bc channels at once.
        z = jnp.dot(x_ref[...], c_ref[...],
                    preferred_element_type=jnp.float32,
                    precision=jax.lax.Precision.HIGHEST)          # (bc*H, Wo)
        # Re-layout (bc*H, Wo) -> (H, bc*Wo): static sublane slices concatenated
        # along lanes (in-VMEM only), so the second matmul is ONE lane-dense matmul
        # instead of bc tiny (Ho,H)@(H,Wo) matmuls + masked stores.
        if bc == 1:
            zt = z
        else:
            zt = jnp.concatenate(
                [z[b * h:(b + 1) * h, :] for b in range(bc)], axis=1)  # (H, bc*Wo)
        # MXU matmul 2: row blur+resample; lane-dense (Ho, bc*Wo) store.
        o_ref[...] = jnp.dot(r_ref[...], zt,
                             preferred_element_type=jnp.float32,
                             precision=jax.lax.Precision.HIGHEST)

    return kernel


# --------------------------------- wrapper -------------------------------------
def anti_alias_interpolation_2d(x_nchw, scale):
    """AntiAliasInterpolation2d.forward for NCHW input, via one fused Pallas call."""
    scale = float(scale)
    if scale == 1.0:
        return x_nchw

    x = x_nchw.astype(jnp.float32)
    n, c, h, w = x.shape
    g, ka, _kb = _gaussian_1d(scale)
    ho = int(np.floor(h * scale))
    wo = int(np.floor(w * scale))

    # Fold pad + separable Gaussian + bilinear resample into R (Ho,H) and C (W,Wo):
    #   out_channel = R @ x_channel @ C
    r_np = _interp_matrix(h, ho) @ _blur_matrix(h, g, ka)
    c_np = (_interp_matrix(w, wo) @ _blur_matrix(w, g, ka)).T
    rmat = jnp.asarray(r_np, dtype=jnp.float32)                   # (Ho, H)
    cmat = jnp.asarray(c_np, dtype=jnp.float32)                   # (W, Wo)

    nc = n * c
    # Channel-block size: >= min(8, nc) grid steps (pipelining + v7x megacore) and
    # <= ~4 MiB per input block (double-buffered; total footprint << 32 MiB scoped).
    budget = 4 * 1024 * 1024
    cap_bytes = max(1, budget // (h * w * 4))
    cap_steps = max(1, nc // 8)
    bc_cap = max(1, min(nc, cap_bytes, cap_steps))
    bc = max(d for d in range(1, bc_cap + 1) if nc % d == 0)
    nblocks = nc // bc

    x3 = x.reshape(nblocks, bc * h, w)        # contiguous view of NCHW, no HBM copy

    kernel = _make_kernel(bc, h, wo)
    out3 = pl.pallas_call(
        kernel,
        out_shape=jax.ShapeDtypeStruct((nblocks, ho, bc * wo), jnp.float32),
        grid=(nblocks,),
        in_specs=[
            pl.BlockSpec((None, bc * h, w), lambda i: (i, 0, 0)),
            pl.BlockSpec((ho, h), lambda i: (0, 0)),
            pl.BlockSpec((w, wo), lambda i: (0, 0)),
        ],
        out_specs=pl.BlockSpec((None, ho, bc * wo), lambda i: (i, 0, 0)),
        compiler_params=pltpu.CompilerParams(
            dimension_semantics=("parallel",),
            vmem_limit_bytes=32 * 1024 * 1024),
    )(x3, rmat, cmat)

    # Un-interleave the lane-packed channels on the (small) output in plain XLA.
    out = out3.reshape(nblocks, ho, bc, wo).transpose(0, 2, 1, 3)
    return out.reshape(n, c, ho, wo).astype(x_nchw.dtype)


class AntiAliasInterpolation2dPallas:
    """Pallas port of AntiAliasInterpolation2d (band-limited downsampling)."""

    def __init__(self, channels, scale):
        self.channels = channels
        self.scale = float(scale)

    def __call__(self, x_nchw):
        return anti_alias_interpolation_2d(x_nchw, self.scale)


# ---------------------- pure-jnp reference (self-check) ------------------------
def _reference(x_nchw, scale):
    """Independent formulation: zero pad + full 2-D tap loop + gather-based bilinear."""
    scale = float(scale)
    if scale == 1.0:
        return x_nchw
    sigma = (1.0 / scale - 1.0) / 2.0
    ksize = 2 * round(sigma * 4) + 1
    ka = ksize // 2
    kb = ka - 1 if ksize % 2 == 0 else ka
    coords = np.arange(ksize, dtype=np.float64)
    mean = (ksize - 1) / 2.0
    g = np.exp(-((coords - mean) ** 2) / (2.0 * sigma ** 2))
    k2 = np.outer(g, g)
    k2 = (k2 / k2.sum()).astype(np.float32)

    x = x_nchw.astype(jnp.float32)
    n, c, h, w = x.shape
    xp = jnp.pad(x, ((0, 0), (0, 0), (ka, kb), (ka, kb)))
    conv = jnp.zeros_like(x)
    for dy in range(ksize):
        for dx in range(ksize):
            conv = conv + float(k2[dy, dx]) * xp[:, :, dy:dy + h, dx:dx + w]

    ho = int(np.floor(h * scale))
    wo = int(np.floor(w * scale))

    def interp_axis(arr, n_in, n_out, axis):
        if n_out == 1:
            i0 = np.zeros(1, np.int32); i1 = np.zeros(1, np.int32)
            fr = np.zeros(1, np.float32)
        else:
            src = np.arange(n_out) * (n_in - 1) / (n_out - 1)
            i0 = np.floor(src).astype(np.int32)
            i1 = np.minimum(i0 + 1, n_in - 1)
            fr = (src - i0).astype(np.float32)
        a0 = jnp.take(arr, jnp.asarray(i0), axis=axis)
        a1 = jnp.take(arr, jnp.asarray(i1), axis=axis)
        shp = [1] * arr.ndim
        shp[axis] = n_out
        frj = jnp.asarray(fr).reshape(shp)
        return a0 * (1.0 - frj) + a1 * frj

    t = interp_axis(conv, h, ho, 2)
    return interp_axis(t, w, wo, 3)


# ----------------------------------- main ---------------------------------------
if __name__ == "__main__":
    key = jax.random.PRNGKey(0)
    # Second case (C=8 -> N*C=16) exercises the bc>1 lane-packed path.
    for case, (N, C, H, W) in enumerate(((2, 4, 16, 16), (2, 8, 16, 16))):
        x = jax.random.uniform(jax.random.fold_in(key, case), (N, C, H, W), jnp.float32)
        for scale in (0.5, 0.25, 1.0):
            mod = AntiAliasInterpolation2dPallas(channels=C, scale=scale)
            out = jax.block_until_ready(mod(x))
            ref = jax.block_until_ready(_reference(x, scale))
            assert out.shape == ref.shape, (scale, out.shape, ref.shape)
            np.testing.assert_allclose(np.asarray(out), np.asarray(ref),
                                       atol=1e-5, rtol=1e-5)
    print("KERNEL_OK")
</pallas_src>

<mosaic_0001>
module attributes {stable_mosaic.version = 11 : i64} {
  func.func @kernel(%arg0: i32, %arg1: memref<1x16x16xf32, #tpu.memory_space<vmem>>, %arg2: memref<8x16xf32, #tpu.memory_space<vmem>>, %arg3: memref<16x8xf32, #tpu.memory_space<vmem>>, %arg4: memref<1x8x8xf32, #tpu.memory_space<vmem>>) attributes {dimension_semantics = [#tpu.dimension_semantics<parallel>], iteration_bounds = array<i64: 8>, scalar_prefetch = 0 : i64, scratch_operands = 0 : i64, tpu.core_type = #tpu.core_type<tc>, window_params = [{transform_indices = @transform_0, window_bounds = array<i64: 1, 16, 16>}, {pipeline_mode = #tpu.pipeline_mode<synchronous>, transform_indices = @transform_1, window_bounds = array<i64: 8, 16>}, {pipeline_mode = #tpu.pipeline_mode<synchronous>, transform_indices = @transform_2, window_bounds = array<i64: 16, 8>}, {transform_indices = @transform_3, window_bounds = array<i64: 1, 8, 8>}]} {
    %c0 = arith.constant 0 : index
    %c0_0 = arith.constant 0 : index
    %c0_1 = arith.constant 0 : index
    %0 = vector.load %arg1[%c0, %c0_0, %c0_1] : memref<1x16x16xf32, #tpu.memory_space<vmem>>, vector<1x16x16xf32>
    %1 = vector.shape_cast %0 : vector<1x16x16xf32> to vector<16x16xf32>
    %c0_2 = arith.constant 0 : index
    %c0_3 = arith.constant 0 : index
    %2 = vector.load %arg3[%c0_2, %c0_3] : memref<16x8xf32, #tpu.memory_space<vmem>>, vector<16x8xf32>
    %cst = arith.constant dense<0.000000e+00> : vector<16x8xf32>
    %3 = tpu.matmul %1, %2, %cst {dimension_numbers = #tpu.dot_dimension_numbers<[1], [0], [0], [1], [0, 0, 1, 1], [], []>, precision = #tpu.contract_precision<fp32>} : vector<16x16xf32>, vector<16x8xf32>, vector<16x8xf32> -> vector<16x8xf32>
    %c0_4 = arith.constant 0 : index
    %c0_5 = arith.constant 0 : index
    %4 = vector.load %arg2[%c0_4, %c0_5] : memref<8x16xf32, #tpu.memory_space<vmem>>, vector<8x16xf32>
    %cst_6 = arith.constant dense<0.000000e+00> : vector<8x8xf32>
    %5 = tpu.matmul %4, %3, %cst_6 {dimension_numbers = #tpu.dot_dimension_numbers<[1], [0], [0], [1], [0, 0, 1, 1], [], []>, precision = #tpu.contract_precision<fp32>} : vector<8x16xf32>, vector<16x8xf32>, vector<8x8xf32> -> vector<8x8xf32>
    %c0_7 = arith.constant 0 : index
    %c0_8 = arith.constant 0 : index
    %c0_9 = arith.constant 0 : index
    %6 = vector.load %arg4[%c0_7, %c0_8, %c0_9] : memref<1x8x8xf32, #tpu.memory_space<vmem>>, vector<1x8x8xf32>
    %7 = vector.shape_cast %6 : vector<1x8x8xf32> to vector<8x8xf32>
    %8 = vector.shape_cast %5 : vector<8x8xf32> to vector<1x8x8xf32>
    tpu.vector_store %arg4[%c0_7, %c0_8, %c0_9], %8 {strides = array<i32>} : memref<1x8x8xf32, #tpu.memory_space<vmem>>, vector<1x8x8xf32>,
    return
  }
  func.func @transform_0(%arg0: i32) -> (i32, i32, i32) {
    %c0_i32 = arith.constant 0 : i32
    %c0_i32_0 = arith.constant 0 : i32
    %c0_i32_1 = arith.constant 0 : i32
    return %arg0, %c0_i32, %c0_i32_0 : i32, i32, i32
  }
  func.func @transform_1(%arg0: i32) -> (i32, i32) {
    %c0_i32 = arith.constant 0 : i32
    %c0_i32_0 = arith.constant 0 : i32
    %c0_i32_1 = arith.constant 0 : i32
    return %c0_i32, %c0_i32_0 : i32, i32
  }
  func.func @transform_2(%arg0: i32) -> (i32, i32) {
    %c0_i32 = arith.constant 0 : i32
    %c0_i32_0 = arith.constant 0 : i32
    %c0_i32_1 = arith.constant 0 : i32
    return %c0_i32, %c0_i32_0 : i32, i32
  }
  func.func @transform_3(%arg0: i32) -> (i32, i32, i32) {
    %c0_i32 = arith.constant 0 : i32
    %c0_i32_0 = arith.constant 0 : i32
    %c0_i32_1 = arith.constant 0 : i32
    return %arg0, %c0_i32, %c0_i32_0 : i32, i32, i32
  }
}

</mosaic_0001>

<llo_original>
// kernel: tpu_custom_call.1
$region0: #{tpu_custom_call.1}
  #allocation0 [shape = 'u32[]', space=smem, size = 0x4, offset = 0x4, fixed_abs, tag = 'smem constant byte address 0x4 - core index']
  #allocation1 [shape = 'u32[72,128]{1,0:T(1,128)}', space=vmem, size = 0x9000, scoped, tag = 'internal scratch']
  %s0 = inlined_call_operand.hbm [shape: f32[8,16,16], index: 0, kind: input, shape index: {}]
  %s1 = inlined_call_operand.vmem [shape: f32[8,16], index: 1, kind: input, shape index: {}]
  %s2 = inlined_call_operand.vmem [shape: f32[16,8], index: 2, kind: input, shape index: {}]
  %s3 = inlined_call_operand.hbm [shape: f32[8,8,8], index: 3, kind: output, shape index: {}]
  %s4 = sld [smem:[#allocation0]]
  $region49: #{tpu_custom_call.1} parent=0
    _
  %s6 = ssub.s32 1, %s4
  %s7 = scalar_select 0, %s6, %s4
  $region1: #{tpu_custom_call.1} parent=0
    #allocation2 [shape = 'u8[16384]{0}', space=vmem, size = 0x4000, scoped, tag = 'input window, operand 0']
    #allocation3 [shape = 's32[2]{0}', space=sflag, size = 0x8, scoped, tag = 'scoped memory for tpu_custom_call.1']
    #allocation4 [shape = 's32[2]{0}', space=sflag, size = 0x8, scoped, tag = 'scoped memory for tpu_custom_call.1']
    #allocation5 [shape = 'u8[8192]{0}', space=vmem, size = 0x2000, scoped, tag = 'output window, operand 0']
    %8 = vsyncpa [#allocation3], 0
    %s9 = scalar_lea.sflag [#allocation3], 1
    %10 = vsyncpa %s9, 0
    %11 = vsyncpa [#allocation4], 0
    %s12 = scalar_lea.sflag [#allocation4], 1
    %13 = vsyncpa %s12, 0
    loop: start=0, step=1, limit=10
    $region2: #{tpu_custom_call.1} parent=1 // loop_pre_header
      _
    $region3: #{tpu_custom_call.1} parent=1 // loop_header
      %s15 = sphi 0, %s19
      %p16 = scmp.ge.s32.totalorder %s15, 10
      %s25 = sphi 0, %s27
      %s28 = sphi 0, %s25
      %s29 = sphi 0, %s28
      %s45 = sphi 0, %s29
      %s49 = sphi 0, %s49
      %s51 = sphi 0, %s49
      %s52 = sphi 0, %s51
      %s66 = sphi 0, %s52
      %s70 = sphi 0, %s70
      %s72 = sphi 0, %s70
      %s73 = sphi 0, %s72
      %s87 = sphi 0, %s73
      %s93 = sphi 0, %s95
      %s96 = sphi 0, %s93
      %s97 = sphi 0, %s96
      %s113 = sphi 0, %s97
    $region4: #{tpu_custom_call.1} parent=1 // loop_header_branch
      %18 = sbr.rel (%p16) target = $region8
    $region5: #{tpu_custom_call.1} parent=1 // loop_body
      %s20 = ssub.s32 %s15, 1
      %s21 = ssub.s32 %s15, 2
      %s22 = sadd.s32 %s15, 1
      %s23 = ssub.s32 %s15, %s22
      %p24 = scmp.eq.s32.totalorder %s23, 0
      %s26 = sadd.s32 %s25, 1
      %s27 = scalar_select %p24, %s25, %s26
      %p30 = pneg %p24
      %p31 = scmp.eq.s32.totalorder %s15, 7
      %p32 = por %p30, %p31
      %p33 = scmp.ne.s32.totalorder %s25, %s28
      %p34 = scmp.eq.s32.totalorder %s15, 0
      %p35 = por %p33, %p34
      %p36 = scmp.ne.s32.totalorder %s25, %s28
      %p37 = scmp.eq.s32.totalorder %s20, 7
      %p38 = por %p36, %p37
      %p39 = scmp.ne.s32.totalorder %s28, %s29
      %p40 = scmp.eq.s32.totalorder %s20, 0
      %p41 = por %p39, %p40
      %p42 = scmp.ne.s32.totalorder %s28, %s29
      %p43 = scmp.eq.s32.totalorder %s21, 7
      %p44 = por %p42, %p43
      %p46 = scmp.ne.s32.totalorder %s29, %s45
      %p47 = scmp.eq.s32.totalorder %s21, 0
      %p48 = por %p46, %p47
      %s50 = sadd.s32 %s49, 1
      %p53 = scmp.eq.s32.totalorder %s15, 7
      %p54 = scmp.ne.s32.totalorder %s49, %s51
      %p55 = scmp.eq.s32.totalorder %s15, 0
      %p56 = por %p54, %p55
      %p57 = scmp.ne.s32.totalorder %s49, %s51
      %p58 = scmp.eq.s32.totalorder %s20, 7
      %p59 = por %p57, %p58
      %p60 = scmp.ne.s32.totalorder %s51, %s52
      %p61 = scmp.eq.s32.totalorder %s20, 0
      %p62 = por %p60, %p61
      %p63 = scmp.ne.s32.totalorder %s51, %s52
      %p64 = scmp.eq.s32.totalorder %s21, 7
      %p65 = por %p63, %p64
      %p67 = scmp.ne.s32.totalorder %s52, %s66
      %p68 = scmp.eq.s32.totalorder %s21, 0
      %p69 = por %p67, %p68
      %s71 = sadd.s32 %s70, 1
      %p74 = scmp.eq.s32.totalorder %s15, 7
      %p75 = scmp.ne.s32.totalorder %s70, %s72
      %p76 = scmp.eq.s32.totalorder %s15, 0
      %p77 = por %p75, %p76
      %p78 = scmp.ne.s32.totalorder %s70, %s72
      %p79 = scmp.eq.s32.totalorder %s20, 7
      %p80 = por %p78, %p79
      %p81 = scmp.ne.s32.totalorder %s72, %s73
      %p82 = scmp.eq.s32.totalorder %s20, 0
      %p83 = por %p81, %p82
      %p84 = scmp.ne.s32.totalorder %s72, %s73
      %p85 = scmp.eq.s32.totalorder %s21, 7
      %p86 = por %p84, %p85
      %p88 = scmp.ne.s32.totalorder %s73, %s87
      %p89 = scmp.eq.s32.totalorder %s21, 0
      %p90 = por %p88, %p89
      %s91 = ssub.s32 %s15, %s22
      %p92 = scmp.eq.s32.totalorder %s91, 0
      %s94 = sadd.s32 %s93, 1
      %s95 = scalar_select %p92, %s93, %s94
      %p98 = pneg %p92
      %p99 = scmp.eq.s32.totalorder %s15, 7
      %p100 = por %p98, %p99
      %p101 = scmp.ne.s32.totalorder %s93, %s96
      %p102 = scmp.eq.s32.totalorder %s15, 0
      %p103 = por %p101, %p102
      %p104 = scmp.ne.s32.totalorder %s93, %s96
      %p105 = scmp.eq.s32.totalorder %s20, 7
      %p106 = por %p104, %p105
      %p107 = scmp.ne.s32.totalorder %s96, %s97
      %p108 = scmp.eq.s32.totalorder %s20, 0
      %p109 = por %p107, %p108
      %p110 = scmp.ne.s32.totalorder %s96, %s97
      %p111 = scmp.eq.s32.totalorder %s21, 7
      %p112 = por %p110, %p111
      %p114 = scmp.ne.s32.totalorder %s97, %s113
      %p115 = scmp.eq.s32.totalorder %s21, 0
      %p116 = por %p114, %p115
      %p117 = scmp.le.s32.totalorder 1, %s15
      %p118 = scmp.lt.s32.totalorder %s15, 9
      %p119 = pnand %p117, %p118
      %p120 = pneg %p119
      // Predicated region
      $region9: #{tpu_custom_call.1} parent=5 // pred_check
        _
      $region10: #{tpu_custom_call.1} parent=5 // pred_check_branch
        %122 = sbr.rel (%p119) target = $region12
      $region11: #{tpu_custom_call.1} parent=5 // pred_region
        %s123 = ssub.s32 %s15, 1
        // Predicated region
        $region13: #{tpu_custom_call.1} parent=11 // pred_check
          %p124 = pneg %p62
        $region14: #{tpu_custom_call.1} parent=11 // pred_check_branch
          %126 = sbr.rel (%p124) target = $region16
        $region15: #{tpu_custom_call.1} parent=11 // pred_region
          _
        $region16: #{tpu_custom_call.1} parent=11 // pred_fallthru
          _
        // Predicated region
        $region17: #{tpu_custom_call.1} parent=11 // pred_check
          %p127 = pneg %p83
        $region18: #{tpu_custom_call.1} parent=11 // pred_check_branch
          %129 = sbr.rel (%p127) target = $region20
        $region19: #{tpu_custom_call.1} parent=11 // pred_region
          _
        $region20: #{tpu_custom_call.1} parent=11 // pred_fallthru
          _
      $region12: #{tpu_custom_call.1} parent=5 // pred_fallthru
        _
      %p130 = scmp.lt.s32.totalorder %s15, 8
      // Predicated region
      $region21: #{tpu_custom_call.1} parent=5 // pred_check
        %p131 = pneg %p130
      $region22: #{tpu_custom_call.1} parent=5 // pred_check_branch
        %133 = sbr.rel (%p131) target = $region24
      $region23: #{tpu_custom_call.1} parent=5 // pred_region
        // Predicated region
        $region25: #{tpu_custom_call.1} parent=23 // pred_check
          %p134 = pneg %p35
        $region26: #{tpu_custom_call.1} parent=23 // pred_check_branch
          %136 = sbr.rel (%p134) target = $region28
        $region27: #{tpu_custom_call.1} parent=23 // pred_region
          %s137 = sand.u32 %s25, 1
          %s138 = scalar_lea.sflag [#allocation3], %s137
          %s139 = sand.u32 %s25, 1
          %s140 = smul.addr %s139, 16
          %s141 = scalar_lea.vmem [#allocation2], %s140
          %143 = vsyncadd %s138, 0
          %s144 = smul.addr %s15, 2
          %s145 = smul.addr %s144, 8
          %s146 = scalar_lea.hbm %s0, %s145
          %s147 = sshll.u32 %s146, 4
          %s148 = int_to_ptr.hbm [resolvable:$true] %s147
          %s149 = sshll.u32 %s141, 4
          %s150 = int_to_ptr.vmem [resolvable:$true] %s149
          %155 = dma.hbm_to_vmem [thread:$0]  %s148, 256, %s150, %s138, 128, 128, 8
        $region28: #{tpu_custom_call.1} parent=23 // pred_fallthru
          _
      $region24: #{tpu_custom_call.1} parent=5 // pred_fallthru
        _
      %p156 = scmp.le.s32.totalorder 1, %s15
      %p157 = scmp.lt.s32.totalorder %s15, 9
      %p158 = pnand %p156, %p157
      %p159 = pneg %p158
      // Predicated region
      $region29: #{tpu_custom_call.1} parent=5 // pred_check
        _
      $region30: #{tpu_custom_call.1} parent=5 // pred_check_branch
        %161 = sbr.rel (%p158) target = $region32
      $region31: #{tpu_custom_call.1} parent=5 // pred_region
        %s162 = ssub.s32 %s15, 1
        %s163 = sand.u32 %s28, 1
        %s164 = scalar_lea.sflag [#allocation3], %s163
        %s165 = sand.u32 %s28, 1
        %s166 = smul.addr %s165, 16
        %s167 = scalar_lea.vmem [#allocation2], %s166
        // Predicated region
        $region33: #{tpu_custom_call.1} parent=31 // pred_check
          %p168 = pneg %p41
        $region34: #{tpu_custom_call.1} parent=31 // pred_check_branch
          %170 = sbr.rel (%p168) target = $region36
        $region35: #{tpu_custom_call.1} parent=31 // pred_region
          %172 = dma.done %s164, 256
        $region36: #{tpu_custom_call.1} parent=31 // pred_fallthru
          _
        %s173 = sand.u32 %s28, 1
        %s174 = scalar_lea.sflag [#allocation3], %s173
        %s175 = sand.u32 %s28, 1
        %s176 = smul.addr %s175, 16
        %s177 = scalar_lea.vmem [#allocation2], %s176
        %p178 = pneg %p41
        %p179 = pneg %p38
        %p180 = pneg %p62
        %p181 = pneg %p59
        %p182 = pneg %p83
        %p183 = pneg %p80
        %p184 = pneg %p109
        %p185 = pneg %p106
        %s186 = sand.u32 %s96, 1
        %s187 = scalar_lea.sflag [#allocation4], %s186
        %s188 = sand.u32 %s96, 1
        %s189 = smul.addr %s188, 8
        %s190 = scalar_lea.vmem [#allocation5], %s189
        %v191 = vld [vmem:[%s167] sm:$0xff]
        %v192 = vld [vmem:[%s167 + $0x8] sm:$0xff]
        %v193 = vld [vmem:[%s2] sm:$0xff]
        %v194 = vld [vmem:[%s2 + $0x8] sm:$0xff]
        %vm195 = vcmask 130048
        %v197 = vsel %vm195, %v191, 0
        %v200 = vsel %vm195, %v192, 0
        %202 = vmatpush.msra.mxu0 0.0
        %203 = vmatpush.msra.mxu0 0.0
        %204 = vmatpush.msra.mxu0 0.0
        %205 = vmatpush.msra.mxu0 0.0
        %206 = vmatpush.msra.mxu0 0.0
        %207 = vmatpush.msra.mxu0 0.0
        %208 = vmatpush.msra.mxu0 0.0
        %209 = vmatpush.msra.mxu0 0.0
        %210 = vmatpush.msra.mxu0 0.0
        %211 = vmatpush.msra.mxu0 0.0
        %212 = vmatpush.msra.mxu0 0.0
        %213 = vmatpush.msra.mxu0 0.0
        %214 = vmatpush.msra.mxu0 0.0
        %215 = vmatpush.msra.mxu0 0.0
        %v216 = vand.u32 %v194, 4294901760
        %217 = vmatpush.msra.mxu0 %v216
        %v218 = vand.u32 %v193, 4294901760
        %219 = vmatpush.msra.mxu0 %v218
        %v220 = vand.u32 %v197, 4294901760
        %v221 = vsub.f32 %v197, %v220
        %v222 = vand.u32 %v221, 4294901760
        %v223 = vsub.f32 %v221, %v222
        %v224 = vand.u32 %v223, 4294901760
        %225 = vmatmul.f32.gmra.mxu0 %v224
        %v226 = vpop.f32.mrf.mxu0
        %v227 = vadd.f32 0.0, %v226
        %v228 = vand.u32 %v200, 4294901760
        %v229 = vsub.f32 %v200, %v228
        %v230 = vand.u32 %v229, 4294901760
        %v231 = vsub.f32 %v229, %v230
        %v232 = vand.u32 %v231, 4294901760
        %233 = vmatmul.f32.gmra.mxu0 %v232
        %v234 = vpop.f32.mrf.mxu0
        %v235 = vadd.f32 0.0, %v234
        %236 = vdwg.mxu0
        %237 = vmatpush.msra.mxu0 0.0
        %238 = vmatpush.msra.mxu0 0.0
        %239 = vmatpush.msra.mxu0 0.0
        %240 = vmatpush.msra.mxu0 0.0
        %241 = vmatpush.msra.mxu0 0.0
        %242 = vmatpush.msra.mxu0 0.0
        %243 = vmatpush.msra.mxu0 0.0
        %244 = vmatpush.msra.mxu0 0.0
        %245 = vmatpush.msra.mxu0 0.0
        %246 = vmatpush.msra.mxu0 0.0
        %247 = vmatpush.msra.mxu0 0.0
        %248 = vmatpush.msra.mxu0 0.0
        %249 = vmatpush.msra.mxu0 0.0
        %250 = vmatpush.msra.mxu0 0.0
        %v251 = vand.u32 %v194, 4294901760
        %v252 = vsub.f32 %v194, %v251
        %v253 = vand.u32 %v252, 4294901760
        %v254 = vsub.f32 %v252, %v253
        %v255 = vand.u32 %v254, 4294901760
        %256 = vmatpush.msra.mxu0 %v255
        %v257 = vand.u32 %v193, 4294901760
        %v258 = vsub.f32 %v193, %v257
        %v259 = vand.u32 %v258, 4294901760
        %v260 = vsub.f32 %v258, %v259
        %v261 = vand.u32 %v260, 4294901760
        %262 = vmatpush.msra.mxu0 %v261
        %v263 = vand.u32 %v197, 4294901760
        %264 = vmatmul.f32.gmra.mxu0 %v263
        %v265 = vpop.f32.mrf.mxu0
        %v266 = vadd.f32 %v227, %v265
        %v267 = vand.u32 %v200, 4294901760
        %268 = vmatmul.f32.gmra.mxu0 %v267
        %v269 = vpop.f32.mrf.mxu0
        %v270 = vadd.f32 %v235, %v269
        %271 = vdwg.mxu0
        %272 = vmatpush.msra.mxu0 0.0
        %273 = vmatpush.msra.mxu0 0.0
        %274 = vmatpush.msra.mxu0 0.0
        %275 = vmatpush.msra.mxu0 0.0
        %276 = vmatpush.msra.mxu0 0.0
        %277 = vmatpush.msra.mxu0 0.0
        %278 = vmatpush.msra.mxu0 0.0
        %279 = vmatpush.msra.mxu0 0.0
        %280 = vmatpush.msra.mxu0 0.0
        %281 = vmatpush.msra.mxu0 0.0
        %282 = vmatpush.msra.mxu0 0.0
        %283 = vmatpush.msra.mxu0 0.0
        %284 = vmatpush.msra.mxu0 0.0
        %285 = vmatpush.msra.mxu0 0.0
        %v286 = vand.u32 %v194, 4294901760
        %v287 = vsub.f32 %v194, %v286
        %288 = vmatpush.msra.mxu0 %v287
        %v289 = vand.u32 %v193, 4294901760
        %v290 = vsub.f32 %v193, %v289
        %291 = vmatpush.msra.mxu0 %v290
        %v292 = vand.u32 %v197, 4294901760
        %v293 = vsub.f32 %v197, %v292
        %294 = vmatmul.f32.gmra.mxu0 %v293
        %v295 = vpop.f32.mrf.mxu0
        %v296 = vadd.f32 %v266, %v295
        %v297 = vand.u32 %v200, 4294901760
        %v298 = vsub.f32 %v200, %v297
        %299 = vmatmul.f32.gmra.mxu0 %v298
        %v300 = vpop.f32.mrf.mxu0
        %v301 = vadd.f32 %v270, %v300
        %302 = vdwg.mxu0
        %303 = vmatpush.msra.mxu0 0.0
        %304 = vmatpush.msra.mxu0 0.0
        %305 = vmatpush.msra.mxu0 0.0
        %306 = vmatpush.msra.mxu0 0.0
        %307 = vmatpush.msra.mxu0 0.0
        %308 = vmatpush.msra.mxu0 0.0
        %309 = vmatpush.msra.mxu0 0.0
        %310 = vmatpush.msra.mxu0 0.0
        %311 = vmatpush.msra.mxu0 0.0
        %312 = vmatpush.msra.mxu0 0.0
        %313 = vmatpush.msra.mxu0 0.0
        %314 = vmatpush.msra.mxu0 0.0
        %315 = vmatpush.msra.mxu0 0.0
        %316 = vmatpush.msra.mxu0 0.0
        %v317 = vand.u32 %v194, 4294901760
        %318 = vmatpush.msra.mxu0 %v317
        %v319 = vand.u32 %v193, 4294901760
        %320 = vmatpush.msra.mxu0 %v319
        %v321 = vand.u32 %v197, 4294901760
        %v322 = vsub.f32 %v197, %v321
        %v323 = vand.u32 %v322, 4294901760
        %324 = vmatmul.f32.gmra.mxu0 %v323
        %v325 = vpop.f32.mrf.mxu0
        %v326 = vadd.f32 %v296, %v325
        %v327 = vand.u32 %v200, 4294901760
        %v328 = vsub.f32 %v200, %v327
        %v329 = vand.u32 %v328, 4294901760
        %330 = vmatmul.f32.gmra.mxu0 %v329
        %v331 = vpop.f32.mrf.mxu0
        %v332 = vadd.f32 %v301, %v331
        %333 = vdwg.mxu0
        %334 = vmatpush.msra.mxu0 0.0
        %335 = vmatpush.msra.mxu0 0.0
        %336 = vmatpush.msra.mxu0 0.0
        %337 = vmatpush.msra.mxu0 0.0
        %338 = vmatpush.msra.mxu0 0.0
        %339 = vmatpush.msra.mxu0 0.0
        %340 = vmatpush.msra.mxu0 0.0
        %341 = vmatpush.msra.mxu0 0.0
        %342 = vmatpush.msra.mxu0 0.0
        %343 = vmatpush.msra.mxu0 0.0
        %344 = vmatpush.msra.mxu0 0.0
        %345 = vmatpush.msra.mxu0 0.0
        %346 = vmatpush.msra.mxu0 0.0
        %347 = vmatpush.msra.mxu0 0.0
        %v348 = vand.u32 %v194, 4294901760
        %v349 = vsub.f32 %v194, %v348
        %v350 = vand.u32 %v349, 4294901760
        %351 = vmatpush.msra.mxu0 %v350
        %v352 = vand.u32 %v193, 4294901760
        %v353 = vsub.f32 %v193, %v352
        %v354 = vand.u32 %v353, 4294901760
        %355 = vmatpush.msra.mxu0 %v354
        %v356 = vand.u32 %v197, 4294901760
        %357 = vmatmul.f32.gmra.mxu0 %v356
        %v358 = vpop.f32.mrf.mxu0
        %v359 = vadd.f32 %v326, %v358
        %v360 = vand.u32 %v200, 4294901760
        %361 = vmatmul.f32.gmra.mxu0 %v360
        %v362 = vpop.f32.mrf.mxu0
        %v363 = vadd.f32 %v332, %v362
        %364 = vdwg.mxu0
        %365 = vmatpush.msra.mxu0 0.0
        %366 = vmatpush.msra.mxu0 0.0
        %367 = vmatpush.msra.mxu0 0.0
        %368 = vmatpush.msra.mxu0 0.0
        %369 = vmatpush.msra.mxu0 0.0
        %370 = vmatpush.msra.mxu0 0.0
        %371 = vmatpush.msra.mxu0 0.0
        %372 = vmatpush.msra.mxu0 0.0
        %373 = vmatpush.msra.mxu0 0.0
        %374 = vmatpush.msra.mxu0 0.0
        %375 = vmatpush.msra.mxu0 0.0
        %376 = vmatpush.msra.mxu0 0.0
        %377 = vmatpush.msra.mxu0 0.0
        %378 = vmatpush.msra.mxu0 0.0
        %v379 = vand.u32 %v194, 4294901760
        %380 = vmatpush.msra.mxu0 %v379
        %v381 = vand.u32 %v193, 4294901760
        %382 = vmatpush.msra.mxu0 %v381
        %v383 = vand.u32 %v197, 4294901760
        %384 = vmatmul.f32.gmra.mxu0 %v383
        %v385 = vpop.f32.mrf.mxu0
        %v386 = vadd.f32 %v359, %v385
        %v387 = vand.u32 %v200, 4294901760
        %388 = vmatmul.f32.gmra.mxu0 %v387
        %v389 = vpop.f32.mrf.mxu0
        %v390 = vadd.f32 %v363, %v389
        %391 = vdwg.mxu0
        %v392 = vld [vmem:[%s1] sm:$0xff]
        %v394 = vsel %vm195, %v392, 0
        %396 = vmatpush.msra.mxu0 0.0
        %397 = vmatpush.msra.mxu0 0.0
        %398 = vmatpush.msra.mxu0 0.0
        %399 = vmatpush.msra.mxu0 0.0
        %400 = vmatpush.msra.mxu0 0.0
        %401 = vmatpush.msra.mxu0 0.0
        %402 = vmatpush.msra.mxu0 0.0
        %403 = vmatpush.msra.mxu0 0.0
        %404 = vmatpush.msra.mxu0 0.0
        %405 = vmatpush.msra.mxu0 0.0
        %406 = vmatpush.msra.mxu0 0.0
        %407 = vmatpush.msra.mxu0 0.0
        %408 = vmatpush.msra.mxu0 0.0
        %409 = vmatpush.msra.mxu0 0.0
        %v410 = vand.u32 %v390, 4294901760
        %411 = vmatpush.msra.mxu0 %v410
        %v412 = vand.u32 %v386, 4294901760
        %413 = vmatpush.msra.mxu0 %v412
        %v414 = vand.u32 %v394, 4294901760
        %v415 = vsub.f32 %v394, %v414
        %v416 = vand.u32 %v415, 4294901760
        %v417 = vsub.f32 %v415, %v416
        %v418 = vand.u32 %v417, 4294901760
        %419 = vmatmul.f32.gmra.mxu0 %v418
        %v420 = vpop.f32.mrf.mxu0
        %v421 = vadd.f32 0.0, %v420
        %422 = vdwg.mxu0
        %423 = vmatpush.msra.mxu0 0.0
        %424 = vmatpush.msra.mxu0 0.0
        %425 = vmatpush.msra.mxu0 0.0
        %426 = vmatpush.msra.mxu0 0.0
        %427 = vmatpush.msra.mxu0 0.0
        %428 = vmatpush.msra.mxu0 0.0
        %429 = vmatpush.msra.mxu0 0.0
        %430 = vmatpush.msra.mxu0 0.0
        %431 = vmatpush.msra.mxu0 0.0
        %432 = vmatpush.msra.mxu0 0.0
        %433 = vmatpush.msra.mxu0 0.0
        %434 = vmatpush.msra.mxu0 0.0
        %435 = vmatpush.msra.mxu0 0.0
        %436 = vmatpush.msra.mxu0 0.0
        %v437 = vand.u32 %v390, 4294901760
        %v438 = vsub.f32 %v390, %v437
        %v439 = vand.u32 %v438, 4294901760
        %v440 = vsub.f32 %v438, %v439
        %v441 = vand.u32 %v440, 4294901760
        %442 = vmatpush.msra.mxu0 %v441
        %v443 = vand.u32 %v386, 4294901760
        %v444 = vsub.f32 %v386, %v443
        %v445 = vand.u32 %v444, 4294901760
        %v446 = vsub.f32 %v444, %v445
        %v447 = vand.u32 %v446, 4294901760
        %448 = vmatpush.msra.mxu0 %v447
        %v449 = vand.u32 %v394, 4294901760
        %450 = vmatmul.f32.gmra.mxu0 %v449
        %v451 = vpop.f32.mrf.mxu0
        %v452 = vadd.f32 %v421, %v451
        %453 = vdwg.mxu0
        %454 = vmatpush.msra.mxu0 0.0
        %455 = vmatpush.msra.mxu0 0.0
        %456 = vmatpush.msra.mxu0 0.0
        %457 = vmatpush.msra.mxu0 0.0
        %458 = vmatpush.msra.mxu0 0.0
        %459 = vmatpush.msra.mxu0 0.0
        %460 = vmatpush.msra.mxu0 0.0
        %461 = vmatpush.msra.mxu0 0.0
        %462 = vmatpush.msra.mxu0 0.0
        %463 = vmatpush.msra.mxu0 0.0
        %464 = vmatpush.msra.mxu0 0.0
        %465 = vmatpush.msra.mxu0 0.0
        %466 = vmatpush.msra.mxu0 0.0
        %467 = vmatpush.msra.mxu0 0.0
        %v468 = vand.u32 %v390, 4294901760
        %v469 = vsub.f32 %v390, %v468
        %470 = vmatpush.msra.mxu0 %v469
        %v471 = vand.u32 %v386, 4294901760
        %v472 = vsub.f32 %v386, %v471
        %473 = vmatpush.msra.mxu0 %v472
        %v474 = vand.u32 %v394, 4294901760
        %v475 = vsub.f32 %v394, %v474
        %476 = vmatmul.f32.gmra.mxu0 %v475
        %v477 = vpop.f32.mrf.mxu0
        %v478 = vadd.f32 %v452, %v477
        %479 = vdwg.mxu0
        %480 = vmatpush.msra.mxu0 0.0
        %481 = vmatpush.msra.mxu0 0.0
        %482 = vmatpush.msra.mxu0 0.0
        %483 = vmatpush.msra.mxu0 0.0
        %484 = vmatpush.msra.mxu0 0.0
        %485 = vmatpush.msra.mxu0 0.0
        %486 = vmatpush.msra.mxu0 0.0
        %487 = vmatpush.msra.mxu0 0.0
        %488 = vmatpush.msra.mxu0 0.0
        %489 = vmatpush.msra.mxu0 0.0
        %490 = vmatpush.msra.mxu0 0.0
        %491 = vmatpush.msra.mxu0 0.0
        %492 = vmatpush.msra.mxu0 0.0
        %493 = vmatpush.msra.mxu0 0.0
        %v494 = vand.u32 %v390, 4294901760
        %495 = vmatpush.msra.mxu0 %v494
        %v496 = vand.u32 %v386, 4294901760
        %497 = vmatpush.msra.mxu0 %v496
        %v498 = vand.u32 %v394, 4294901760
        %v499 = vsub.f32 %v394, %v498
        %v500 = vand.u32 %v499, 4294901760
        %501 = vmatmul.f32.gmra.mxu0 %v500
        %v502 = vpop.f32.mrf.mxu0
        %v503 = vadd.f32 %v478, %v502
        %504 = vdwg.mxu0
        %505 = vmatpush.msra.mxu0 0.0
        %506 = vmatpush.msra.mxu0 0.0
        %507 = vmatpush.msra.mxu0 0.0
        %508 = vmatpush.msra.mxu0 0.0
        %509 = vmatpush.msra.mxu0 0.0
        %510 = vmatpush.msra.mxu0 0.0
        %511 = vmatpush.msra.mxu0 0.0
        %512 = vmatpush.msra.mxu0 0.0
        %513 = vmatpush.msra.mxu0 0.0
        %514 = vmatpush.msra.mxu0 0.0
        %515 = vmatpush.msra.mxu0 0.0
        %516 = vmatpush.msra.mxu0 0.0
        %517 = vmatpush.msra.mxu0 0.0
        %518 = vmatpush.msra.mxu0 0.0
        %v519 = vand.u32 %v390, 4294901760
        %v520 = vsub.f32 %v390, %v519
        %v521 = vand.u32 %v520, 4294901760
        %522 = vmatpush.msra.mxu0 %v521
        %v523 = vand.u32 %v386, 4294901760
        %v524 = vsub.f32 %v386, %v523
        %v525 = vand.u32 %v524, 4294901760
        %526 = vmatpush.msra.mxu0 %v525
        %v527 = vand.u32 %v394, 4294901760
        %528 = vmatmul.f32.gmra.mxu0 %v527
        %v529 = vpop.f32.mrf.mxu0
        %v530 = vadd.f32 %v503, %v529
        %531 = vdwg.mxu0
        %532 = vmatpush.msra.mxu0 0.0
        %533 = vmatpush.msra.mxu0 0.0
        %534 = vmatpush.msra.mxu0 0.0
        %535 = vmatpush.msra.mxu0 0.0
        %536 = vmatpush.msra.mxu0 0.0
        %537 = vmatpush.msra.mxu0 0.0
        %538 = vmatpush.msra.mxu0 0.0
        %539 = vmatpush.msra.mxu0 0.0
        %540 = vmatpush.msra.mxu0 0.0
        %541 = vmatpush.msra.mxu0 0.0
        %542 = vmatpush.msra.mxu0 0.0
        %543 = vmatpush.msra.mxu0 0.0
        %544 = vmatpush.msra.mxu0 0.0
        %545 = vmatpush.msra.mxu0 0.0
        %v546 = vand.u32 %v390, 4294901760
        %547 = vmatpush.msra.mxu0 %v546
        %v548 = vand.u32 %v386, 4294901760
        %549 = vmatpush.msra.mxu0 %v548
        %v550 = vand.u32 %v394, 4294901760
        %551 = vmatmul.f32.gmra.mxu0 %v550
        %v552 = vpop.f32.mrf.mxu0
        %v553 = vadd.f32 %v530, %v552
        %554 = vdwg.mxu0
        %vm555 = vcmask 64512
        %556 = vst.msk [vmem:[%s190] sm:$0xff] %vm555, %v553
        %s557 = sand.u32 %s96, 1
        %s558 = scalar_lea.sflag [#allocation4], %s557
        %s559 = sand.u32 %s96, 1
        %s560 = smul.addr %s559, 8
        %s561 = scalar_lea.vmem [#allocation5], %s560
        // Predicated region
        $region37: #{tpu_custom_call.1} parent=31 // pred_check
          %p562 = pneg %p106
        $region38: #{tpu_custom_call.1} parent=31 // pred_check_branch
          %564 = sbr.rel (%p562) target = $region40
        $region39: #{tpu_custom_call.1} parent=31 // pred_region
          %566 = vsyncadd %s558, 0
          %s567 = smul.addr %s20, 8
          %s568 = scalar_lea.hbm %s3, %s567
          %s570 = sshll.u32 %s561, 4
          %s571 = int_to_ptr.vmem [resolvable:$true] %s570
          %s572 = sshll.u32 %s568, 4
          %s573 = int_to_ptr.hbm [resolvable:$true] %s572
          %575 = dma.vmem_to_hbm [thread:$0]  %s571, 128, %s573, %s558
        $region40: #{tpu_custom_call.1} parent=31 // pred_fallthru
          _
      $region32: #{tpu_custom_call.1} parent=5 // pred_fallthru
        _
      %p576 = scmp.le.s32.totalorder 2, %s15
      // Predicated region
      $region41: #{tpu_custom_call.1} parent=5 // pred_check
        %p577 = pneg %p576
      $region42: #{tpu_custom_call.1} parent=5 // pred_check_branch
        %579 = sbr.rel (%p577) target = $region44
      $region43: #{tpu_custom_call.1} parent=5 // pred_region
        %s580 = ssub.s32 %s15, 2
        // Predicated region
        $region45: #{tpu_custom_call.1} parent=43 // pred_check
          %p581 = pneg %p112
        $region46: #{tpu_custom_call.1} parent=43 // pred_check_branch
          %583 = sbr.rel (%p581) target = $region48
        $region47: #{tpu_custom_call.1} parent=43 // pred_region
          %s584 = sand.u32 %s97, 1
          %s585 = scalar_lea.sflag [#allocation4], %s584
          %s586 = sand.u32 %s97, 1
          %s587 = smul.addr %s586, 8
          %s588 = scalar_lea.vmem [#allocation5], %s587
          %590 = dma.done %s585, 128
        $region48: #{tpu_custom_call.1} parent=43 // pred_fallthru
          _
      $region44: #{tpu_custom_call.1} parent=5 // pred_fallthru
        _
    $region6: #{tpu_custom_call.1} parent=1 // loop_footer
      %s19 = sadd.s32 1, %s15
    $region7: #{tpu_custom_call.1} parent=1 // loop_footer_branch
      %14 = sbr.rel target = $region3
    $region8: #{tpu_custom_call.1} parent=1 // loop_exit
      _
    %591 = vsyncpa [#allocation3], 1
    %s592 = scalar_lea.sflag [#allocation3], 1
    %593 = vsyncpa %s592, 1
    %594 = vsyncpa [#allocation4], 1
    %s595 = scalar_lea.sflag [#allocation4], 1
    %596 = vsyncpa %s595, 1

</llo_original>
